<compile_context>
chip_gen: v7x
topology: tpu7x:2x2x1
jax: 0.10.0
libtpu: 0.0.40
codegen_flags: <defaults>
</compile_context>

<pallas_src>
import jax
import jax.numpy as jnp
import numpy as np
from jax.experimental import pallas as pl
from jax.experimental.pallas import tpu as pltpu

SUBLANE = 8    # f32 sublane granularity; feature dims are rounded up to this.
LANE = 128


def _round_up(v, m):
    return (v + m - 1) // m * m


# ----------------------------------------------------------------------------
# Pallas kernel: all GraphConv(aggr='mean') + GELU layers, whole batch, one call
# ----------------------------------------------------------------------------
def make_fused_gnn_kernel(n_layers, batch):
    inv_sqrt2 = 0.7071067811865476

    def kernel(*refs):
        # refs = (a, x, w_rel_0, w_root_0, b_0, ..., w_rel_{L-1}, w_root_{L-1},
        #         b_{L-1}, out)
        a_ref, x_ref = refs[0], refs[1]
        o_ref = refs[-1]
        layer_refs = refs[2:-1]

        a = a_ref[...]                               # (Np, Np) mean-agg matrix
        hs = [x_ref[b] for b in range(batch)]        # per-batch (Np, F0p), in vregs
        for l in range(n_layers):                    # unrolled over layers
            w_rel = layer_refs[3 * l][...]           # (fin_p, fout_p)
            w_root = layer_refs[3 * l + 1][...]      # (fin_p, fout_p)
            bias = layer_refs[3 * l + 2][...]        # (1, fout_p)
            new_hs = []
            for b in range(batch):                   # unrolled; B is tiny & static
                h = hs[b]
                # neighbor mean aggregation for this graph copy (no kron, no zeros)
                agg = jnp.dot(a, h, preferred_element_type=jnp.float32)
                # two accumulated MXU dots instead of concat + merged dot
                out = (jnp.dot(agg, w_rel, preferred_element_type=jnp.float32)
                       + jnp.dot(h, w_root, preferred_element_type=jnp.float32)
                       + bias)
                # exact (erf) GELU, matching torch.nn.GELU() default;
                # zero-padded lanes stay exactly 0 (zero weight cols, zero bias)
                new_hs.append(0.5 * out * (1.0 + jax.lax.erf(out * inv_sqrt2)))
            hs = new_hs
        for b in range(batch):
            o_ref[b] = hs[b].astype(o_ref.dtype)

    return kernel


def intersection_gnn_forward(x, a, packed_params, f_out):
    """x: [B, N, F0], a: [N, N] mean-agg matrix -> [B, N, f_out]."""
    B, N, F0 = x.shape
    n_p = _round_up(N, SUBLANE)
    f0_p = packed_params[0]["w_rel"].shape[0]    # padded fin of layer 0
    fl_p = packed_params[-1]["w_rel"].shape[1]   # padded fout of last layer

    x = x.astype(jnp.float32)
    a = a.astype(jnp.float32)
    # Pad only if needed (for the example sizes these are no-ops: N, F already
    # multiples of 8).
    if (n_p, f0_p) != (N, F0):
        x = jnp.zeros((B, n_p, f0_p), jnp.float32).at[:, :N, :F0].set(x)
    if n_p != N:
        a = jnp.zeros((n_p, n_p), jnp.float32).at[:N, :N].set(a)

    flat_inputs = [a, x]
    for p in packed_params:
        flat_inputs += [p["w_rel"], p["w_root"], p["b"]]

    vmem = pl.BlockSpec(memory_space=pltpu.MemorySpace.VMEM)
    out = pl.pallas_call(
        make_fused_gnn_kernel(len(packed_params), B),
        out_shape=jax.ShapeDtypeStruct((B, n_p, fl_p), jnp.float32),
        in_specs=[vmem] * len(flat_inputs),
        out_specs=vmem,
    )(*flat_inputs)
    return out[:, :N, :f_out]


# ----------------------------------------------------------------------------
# Glue: adjacency -> mean-aggregation matrix, parameter construction / packing
# ----------------------------------------------------------------------------
def build_edge_index(adj_list):
    """adj_list[i] = neighbors of i. Edge (j -> i) for every j in adj_list[i]."""
    src, dst = [], []
    for i, nbrs in enumerate(adj_list):
        for j in nbrs:
            src.append(j)
            dst.append(i)
    return np.asarray([src, dst], dtype=np.int32)        # [2, E]


def build_mean_agg_matrix(edge_index, n_nodes):
    A = np.zeros((n_nodes, n_nodes), dtype=np.float32)
    src, dst = edge_index
    for j, i in zip(src, dst):
        A[i, j] += 1.0
    deg = A.sum(axis=1, keepdims=True)
    deg = np.where(deg > 0, deg, 1.0)
    return A / deg


def init_params(sizes, key):
    """Deterministic params for each GraphConv layer (lin_rel w/ bias, lin_root)."""
    params = []
    for fin, fout in zip(sizes[:-1], sizes[1:]):
        key, k1, k2, k3 = jax.random.split(key, 4)
        scale = 1.0 / np.sqrt(fin)
        w_rel = jax.random.uniform(k1, (fout, fin), jnp.float32, -scale, scale)
        w_root = jax.random.uniform(k2, (fout, fin), jnp.float32, -scale, scale)
        b_rel = jax.random.uniform(k3, (fout,), jnp.float32, -scale, scale)
        params.append({"w_rel": w_rel, "w_root": w_root, "b_rel": b_rel})
    return params


def pack_params(params):
    """Transpose to (fin, fout), rounding dims up to a multiple of 8 only."""
    packed = []
    for p in params:
        fout, fin = p["w_rel"].shape
        fin_p = _round_up(fin, SUBLANE)
        fout_p = _round_up(fout, SUBLANE)
        w_rel = np.zeros((fin_p, fout_p), np.float32)
        w_rel[:fin, :fout] = np.asarray(p["w_rel"]).T     # acts on agg
        w_root = np.zeros((fin_p, fout_p), np.float32)
        w_root[:fin, :fout] = np.asarray(p["w_root"]).T   # acts on x
        b = np.zeros((1, fout_p), np.float32)
        b[0, :fout] = np.asarray(p["b_rel"])
        packed.append({"w_rel": jnp.asarray(w_rel),
                       "w_root": jnp.asarray(w_root),
                       "b": jnp.asarray(b)})
    return packed


# pure-JAX reference for correctness checking
def reference_forward(x, a, params):
    for p in params:
        agg = jnp.einsum("ij,bjf->bif", a, x)
        out = agg @ p["w_rel"].T + x @ p["w_root"].T + p["b_rel"]
        x = 0.5 * out * (1.0 + jax.lax.erf(out * 0.7071067811865476))
    return x


if __name__ == "__main__":
    batch = 2
    n_intersections = 8
    sizes = [16, 32, 16]          # GNN layer widths (features per node)

    # simple ring graph over the intersections (bidirectional)
    adj_list = [[(i - 1) % n_intersections, (i + 1) % n_intersections]
                for i in range(n_intersections)]
    edge_index = build_edge_index(adj_list)
    a = build_mean_agg_matrix(edge_index, n_intersections)           # (N, N)

    key = jax.random.PRNGKey(0)
    key, kx = jax.random.split(key)
    x = jax.random.normal(kx, (batch, n_intersections, sizes[0]), jnp.float32)
    params = init_params(sizes, key)
    packed = pack_params(params)

    fwd = jax.jit(intersection_gnn_forward, static_argnames="f_out")
    out = jax.block_until_ready(fwd(x, jnp.asarray(a), packed, f_out=sizes[-1]))

    ref = reference_forward(x, jnp.asarray(a), params)
    np.testing.assert_allclose(np.asarray(out), np.asarray(ref),
                               rtol=1e-5, atol=1e-5)

    assert out.shape == (batch, n_intersections, sizes[-1])
    print("KERNEL_OK")
</pallas_src>

<mosaic_0001>
module attributes {stable_mosaic.version = 11 : i64} {
  func.func @kernel(%arg0: memref<8x8xf32, #tpu.memory_space<vmem>>, %arg1: memref<2x8x16xf32, #tpu.memory_space<vmem>>, %arg2: memref<16x32xf32, #tpu.memory_space<vmem>>, %arg3: memref<16x32xf32, #tpu.memory_space<vmem>>, %arg4: memref<1x32xf32, #tpu.memory_space<vmem>>, %arg5: memref<32x16xf32, #tpu.memory_space<vmem>>, %arg6: memref<32x16xf32, #tpu.memory_space<vmem>>, %arg7: memref<1x16xf32, #tpu.memory_space<vmem>>, %arg8: memref<2x8x16xf32, #tpu.memory_space<vmem>>) attributes {dimension_semantics = [], scalar_prefetch = 0 : i64, scratch_operands = 0 : i64, tpu.core_type = #tpu.core_type<tc>} {
    %c0 = arith.constant 0 : index
    %c0_0 = arith.constant 0 : index
    %0 = vector.load %arg0[%c0, %c0_0] : memref<8x8xf32, #tpu.memory_space<vmem>>, vector<8x8xf32>
    %c0_1 = arith.constant 0 : index
    %c0_2 = arith.constant 0 : index
    %c0_3 = arith.constant 0 : index
    %1 = vector.load %arg1[%c0_1, %c0_2, %c0_3] : memref<2x8x16xf32, #tpu.memory_space<vmem>>, vector<1x8x16xf32>
    %2 = vector.shape_cast %1 : vector<1x8x16xf32> to vector<8x16xf32>
    %c1 = arith.constant 1 : index
    %c0_4 = arith.constant 0 : index
    %c0_5 = arith.constant 0 : index
    %3 = vector.load %arg1[%c1, %c0_4, %c0_5] : memref<2x8x16xf32, #tpu.memory_space<vmem>>, vector<1x8x16xf32>
    %4 = vector.shape_cast %3 : vector<1x8x16xf32> to vector<8x16xf32>
    %c0_6 = arith.constant 0 : index
    %c0_7 = arith.constant 0 : index
    %5 = vector.load %arg2[%c0_6, %c0_7] : memref<16x32xf32, #tpu.memory_space<vmem>>, vector<16x32xf32>
    %c0_8 = arith.constant 0 : index
    %c0_9 = arith.constant 0 : index
    %6 = vector.load %arg3[%c0_8, %c0_9] : memref<16x32xf32, #tpu.memory_space<vmem>>, vector<16x32xf32>
    %c0_10 = arith.constant 0 : index
    %c0_11 = arith.constant 0 : index
    %7 = vector.load %arg4[%c0_10, %c0_11] : memref<1x32xf32, #tpu.memory_space<vmem>>, vector<1x32xf32>
    %cst = arith.constant dense<0.000000e+00> : vector<8x16xf32>
    %8 = tpu.matmul %0, %2, %cst {dimension_numbers = #tpu.dot_dimension_numbers<[1], [0], [0], [1], [0, 0, 1, 1], [], []>} : vector<8x8xf32>, vector<8x16xf32>, vector<8x16xf32> -> vector<8x16xf32>
    %cst_12 = arith.constant dense<0.000000e+00> : vector<8x32xf32>
    %9 = tpu.matmul %8, %5, %cst_12 {dimension_numbers = #tpu.dot_dimension_numbers<[1], [0], [0], [1], [0, 0, 1, 1], [], []>} : vector<8x16xf32>, vector<16x32xf32>, vector<8x32xf32> -> vector<8x32xf32>
    %cst_13 = arith.constant dense<0.000000e+00> : vector<8x32xf32>
    %10 = tpu.matmul %2, %6, %cst_13 {dimension_numbers = #tpu.dot_dimension_numbers<[1], [0], [0], [1], [0, 0, 1, 1], [], []>} : vector<8x16xf32>, vector<16x32xf32>, vector<8x32xf32> -> vector<8x32xf32>
    %11 = arith.addf %9, %10 : vector<8x32xf32>
    %12 = vector.broadcast %7 : vector<1x32xf32> to vector<8x32xf32>
    %13 = arith.addf %11, %12 : vector<8x32xf32>
    %cst_14 = arith.constant 5.000000e-01 : f32
    %14 = vector.broadcast %cst_14 : f32 to vector<8x32xf32>
    %15 = arith.mulf %14, %13 : vector<8x32xf32>
    %cst_15 = arith.constant 0.707106769 : f32
    %16 = vector.broadcast %cst_15 : f32 to vector<8x32xf32>
    %17 = arith.mulf %13, %16 : vector<8x32xf32>
    %18 = math.erf %17 : vector<8x32xf32>
    %cst_16 = arith.constant 1.000000e+00 : f32
    %19 = vector.broadcast %cst_16 : f32 to vector<8x32xf32>
    %20 = arith.addf %19, %18 : vector<8x32xf32>
    %21 = arith.mulf %15, %20 : vector<8x32xf32>
    %cst_17 = arith.constant dense<0.000000e+00> : vector<8x16xf32>
    %22 = tpu.matmul %0, %4, %cst_17 {dimension_numbers = #tpu.dot_dimension_numbers<[1], [0], [0], [1], [0, 0, 1, 1], [], []>} : vector<8x8xf32>, vector<8x16xf32>, vector<8x16xf32> -> vector<8x16xf32>
    %cst_18 = arith.constant dense<0.000000e+00> : vector<8x32xf32>
    %23 = tpu.matmul %22, %5, %cst_18 {dimension_numbers = #tpu.dot_dimension_numbers<[1], [0], [0], [1], [0, 0, 1, 1], [], []>} : vector<8x16xf32>, vector<16x32xf32>, vector<8x32xf32> -> vector<8x32xf32>
    %cst_19 = arith.constant dense<0.000000e+00> : vector<8x32xf32>
    %24 = tpu.matmul %4, %6, %cst_19 {dimension_numbers = #tpu.dot_dimension_numbers<[1], [0], [0], [1], [0, 0, 1, 1], [], []>} : vector<8x16xf32>, vector<16x32xf32>, vector<8x32xf32> -> vector<8x32xf32>
    %25 = arith.addf %23, %24 : vector<8x32xf32>
    %26 = vector.broadcast %7 : vector<1x32xf32> to vector<8x32xf32>
    %27 = arith.addf %25, %26 : vector<8x32xf32>
    %cst_20 = arith.constant 5.000000e-01 : f32
    %28 = vector.broadcast %cst_20 : f32 to vector<8x32xf32>
    %29 = arith.mulf %28, %27 : vector<8x32xf32>
    %cst_21 = arith.constant 0.707106769 : f32
    %30 = vector.broadcast %cst_21 : f32 to vector<8x32xf32>
    %31 = arith.mulf %27, %30 : vector<8x32xf32>
    %32 = math.erf %31 : vector<8x32xf32>
    %cst_22 = arith.constant 1.000000e+00 : f32
    %33 = vector.broadcast %cst_22 : f32 to vector<8x32xf32>
    %34 = arith.addf %33, %32 : vector<8x32xf32>
    %35 = arith.mulf %29, %34 : vector<8x32xf32>
    %c0_23 = arith.constant 0 : index
    %c0_24 = arith.constant 0 : index
    %36 = vector.load %arg5[%c0_23, %c0_24] : memref<32x16xf32, #tpu.memory_space<vmem>>, vector<32x16xf32>
    %c0_25 = arith.constant 0 : index
    %c0_26 = arith.constant 0 : index
    %37 = vector.load %arg6[%c0_25, %c0_26] : memref<32x16xf32, #tpu.memory_space<vmem>>, vector<32x16xf32>
    %c0_27 = arith.constant 0 : index
    %c0_28 = arith.constant 0 : index
    %38 = vector.load %arg7[%c0_27, %c0_28] : memref<1x16xf32, #tpu.memory_space<vmem>>, vector<1x16xf32>
    %cst_29 = arith.constant dense<0.000000e+00> : vector<8x32xf32>
    %39 = tpu.matmul %0, %21, %cst_29 {dimension_numbers = #tpu.dot_dimension_numbers<[1], [0], [0], [1], [0, 0, 1, 1], [], []>} : vector<8x8xf32>, vector<8x32xf32>, vector<8x32xf32> -> vector<8x32xf32>
    %cst_30 = arith.constant dense<0.000000e+00> : vector<8x16xf32>
    %40 = tpu.matmul %39, %36, %cst_30 {dimension_numbers = #tpu.dot_dimension_numbers<[1], [0], [0], [1], [0, 0, 1, 1], [], []>} : vector<8x32xf32>, vector<32x16xf32>, vector<8x16xf32> -> vector<8x16xf32>
    %cst_31 = arith.constant dense<0.000000e+00> : vector<8x16xf32>
    %41 = tpu.matmul %21, %37, %cst_31 {dimension_numbers = #tpu.dot_dimension_numbers<[1], [0], [0], [1], [0, 0, 1, 1], [], []>} : vector<8x32xf32>, vector<32x16xf32>, vector<8x16xf32> -> vector<8x16xf32>
    %42 = arith.addf %40, %41 : vector<8x16xf32>
    %43 = vector.broadcast %38 : vector<1x16xf32> to vector<8x16xf32>
    %44 = arith.addf %42, %43 : vector<8x16xf32>
    %cst_32 = arith.constant 5.000000e-01 : f32
    %45 = vector.broadcast %cst_32 : f32 to vector<8x16xf32>
    %46 = arith.mulf %45, %44 : vector<8x16xf32>
    %cst_33 = arith.constant 0.707106769 : f32
    %47 = vector.broadcast %cst_33 : f32 to vector<8x16xf32>
    %48 = arith.mulf %44, %47 : vector<8x16xf32>
    %49 = math.erf %48 : vector<8x16xf32>
    %cst_34 = arith.constant 1.000000e+00 : f32
    %50 = vector.broadcast %cst_34 : f32 to vector<8x16xf32>
    %51 = arith.addf %50, %49 : vector<8x16xf32>
    %52 = arith.mulf %46, %51 : vector<8x16xf32>
    %cst_35 = arith.constant dense<0.000000e+00> : vector<8x32xf32>
    %53 = tpu.matmul %0, %35, %cst_35 {dimension_numbers = #tpu.dot_dimension_numbers<[1], [0], [0], [1], [0, 0, 1, 1], [], []>} : vector<8x8xf32>, vector<8x32xf32>, vector<8x32xf32> -> vector<8x32xf32>
    %cst_36 = arith.constant dense<0.000000e+00> : vector<8x16xf32>
    %54 = tpu.matmul %53, %36, %cst_36 {dimension_numbers = #tpu.dot_dimension_numbers<[1], [0], [0], [1], [0, 0, 1, 1], [], []>} : vector<8x32xf32>, vector<32x16xf32>, vector<8x16xf32> -> vector<8x16xf32>
    %cst_37 = arith.constant dense<0.000000e+00> : vector<8x16xf32>
    %55 = tpu.matmul %35, %37, %cst_37 {dimension_numbers = #tpu.dot_dimension_numbers<[1], [0], [0], [1], [0, 0, 1, 1], [], []>} : vector<8x32xf32>, vector<32x16xf32>, vector<8x16xf32> -> vector<8x16xf32>
    %56 = arith.addf %54, %55 : vector<8x16xf32>
    %57 = vector.broadcast %38 : vector<1x16xf32> to vector<8x16xf32>
    %58 = arith.addf %56, %57 : vector<8x16xf32>
    %cst_38 = arith.constant 5.000000e-01 : f32
    %59 = vector.broadcast %cst_38 : f32 to vector<8x16xf32>
    %60 = arith.mulf %59, %58 : vector<8x16xf32>
    %cst_39 = arith.constant 0.707106769 : f32
    %61 = vector.broadcast %cst_39 : f32 to vector<8x16xf32>
    %62 = arith.mulf %58, %61 : vector<8x16xf32>
    %63 = math.erf %62 : vector<8x16xf32>
    %cst_40 = arith.constant 1.000000e+00 : f32
    %64 = vector.broadcast %cst_40 : f32 to vector<8x16xf32>
    %65 = arith.addf %64, %63 : vector<8x16xf32>
    %66 = arith.mulf %60, %65 : vector<8x16xf32>
    %c0_41 = arith.constant 0 : index
    %c0_42 = arith.constant 0 : index
    %c0_43 = arith.constant 0 : index
    %67 = vector.load %arg8[%c0_41, %c0_42, %c0_43] : memref<2x8x16xf32, #tpu.memory_space<vmem>>, vector<1x8x16xf32>
    %68 = vector.shape_cast %67 : vector<1x8x16xf32> to vector<8x16xf32>
    %69 = vector.shape_cast %52 : vector<8x16xf32> to vector<1x8x16xf32>
    tpu.vector_store %arg8[%c0_41, %c0_42, %c0_43], %69 {strides = array<i32>} : memref<2x8x16xf32, #tpu.memory_space<vmem>>, vector<1x8x16xf32>,
    %c1_44 = arith.constant 1 : index
    %c0_45 = arith.constant 0 : index
    %c0_46 = arith.constant 0 : index
    %70 = vector.load %arg8[%c1_44, %c0_45, %c0_46] : memref<2x8x16xf32, #tpu.memory_space<vmem>>, vector<1x8x16xf32>
    %71 = vector.shape_cast %70 : vector<1x8x16xf32> to vector<8x16xf32>
    %72 = vector.shape_cast %66 : vector<8x16xf32> to vector<1x8x16xf32>
    tpu.vector_store %arg8[%c1_44, %c0_45, %c0_46], %72 {strides = array<i32>} : memref<2x8x16xf32, #tpu.memory_space<vmem>>, vector<1x8x16xf32>,
    return
  }
}

</mosaic_0001>

<llo_original>
// kernel: intersection_gnn_forward.1
$region0: #{intersection_gnn_forward.1}
  #allocation0 [shape = 'u32[]', space=smem, size = 0x4, offset = 0x4, fixed_abs, tag = 'smem constant byte address 0x4 - core index']
  #allocation1 [shape = 'u32[144,128]{1,0:T(1,128)}', space=vmem, size = 0x12000, scoped, tag = 'internal scratch']
  %s0 = inlined_call_operand.vmem [shape: f32[8,8], index: 0, kind: input, shape index: {}]
  %s1 = inlined_call_operand.vmem [shape: f32[2,8,16], index: 1, kind: input, shape index: {}]
  %s2 = inlined_call_operand.vmem [shape: f32[16,32], index: 2, kind: input, shape index: {}]
  %s3 = inlined_call_operand.vmem [shape: f32[16,32], index: 3, kind: input, shape index: {}]
  %s4 = inlined_call_operand.vmem [shape: f32[1,32], index: 4, kind: input, shape index: {}]
  %s5 = inlined_call_operand.vmem [shape: f32[32,16], index: 5, kind: input, shape index: {}]
  %s6 = inlined_call_operand.vmem [shape: f32[32,16], index: 6, kind: input, shape index: {}]
  %s7 = inlined_call_operand.vmem [shape: f32[1,16], index: 7, kind: input, shape index: {}]
  %s8 = inlined_call_operand.hbm [shape: f32[2,8,16], index: 8, kind: output, shape index: {}]
  %s9 = sld [smem:[#allocation0]]
  $region42: #{intersection_gnn_forward.1} parent=0
    _
  %s11 = ssub.s32 1, %s9
  %s12 = scalar_select 0, %s11, %s9
  $region1: #{intersection_gnn_forward.1} parent=0
    #allocation2 [shape = 'u8[8192]{0}', space=vmem, size = 0x2000, scoped, tag = 'output window, operand 0, single buffered']
    #allocation3 [shape = 's32[1]{0}', space=sflag, size = 0x4, scoped, tag = 'scoped memory for intersection_gnn_forward.1']
    %13 = vsyncpa [#allocation3], 0
    // Predicated region
    $region2: #{intersection_gnn_forward.1} parent=1 // pred_check
      _
    $region3: #{intersection_gnn_forward.1} parent=1 // pred_check_branch
      %15 = sbr.rel (0) target = $region5
    $region4: #{intersection_gnn_forward.1} parent=1 // pred_region
      _
    $region5: #{intersection_gnn_forward.1} parent=1 // pred_fallthru
      _
    // Predicated region
    $region6: #{intersection_gnn_forward.1} parent=1 // pred_check
      _
    $region7: #{intersection_gnn_forward.1} parent=1 // pred_check_branch
      %17 = sbr.rel (0) target = $region9
    $region8: #{intersection_gnn_forward.1} parent=1 // pred_region
      _
    $region9: #{intersection_gnn_forward.1} parent=1 // pred_fallthru
      _
    // Predicated region
    $region10: #{intersection_gnn_forward.1} parent=1 // pred_check
      _
    $region11: #{intersection_gnn_forward.1} parent=1 // pred_check_branch
      %19 = sbr.rel (0) target = $region13
    $region12: #{intersection_gnn_forward.1} parent=1 // pred_region
      _
    $region13: #{intersection_gnn_forward.1} parent=1 // pred_fallthru
      _
    // Predicated region
    $region14: #{intersection_gnn_forward.1} parent=1 // pred_check
      _
    $region15: #{intersection_gnn_forward.1} parent=1 // pred_check_branch
      %21 = sbr.rel (0) target = $region17
    $region16: #{intersection_gnn_forward.1} parent=1 // pred_region
      _
    $region17: #{intersection_gnn_forward.1} parent=1 // pred_fallthru
      _
    // Predicated region
    $region18: #{intersection_gnn_forward.1} parent=1 // pred_check
      _
    $region19: #{intersection_gnn_forward.1} parent=1 // pred_check_branch
      %23 = sbr.rel (0) target = $region21
    $region20: #{intersection_gnn_forward.1} parent=1 // pred_region
      _
    $region21: #{intersection_gnn_forward.1} parent=1 // pred_fallthru
      _
    // Predicated region
    $region22: #{intersection_gnn_forward.1} parent=1 // pred_check
      _
    $region23: #{intersection_gnn_forward.1} parent=1 // pred_check_branch
      %25 = sbr.rel (0) target = $region25
    $region24: #{intersection_gnn_forward.1} parent=1 // pred_region
      _
    $region25: #{intersection_gnn_forward.1} parent=1 // pred_fallthru
      _
    // Predicated region
    $region26: #{intersection_gnn_forward.1} parent=1 // pred_check
      _
    $region27: #{intersection_gnn_forward.1} parent=1 // pred_check_branch
      %27 = sbr.rel (0) target = $region29
    $region28: #{intersection_gnn_forward.1} parent=1 // pred_region
      _
    $region29: #{intersection_gnn_forward.1} parent=1 // pred_fallthru
      _
    // Predicated region
    $region30: #{intersection_gnn_forward.1} parent=1 // pred_check
      _
    $region31: #{intersection_gnn_forward.1} parent=1 // pred_check_branch
      %29 = sbr.rel (0) target = $region33
    $region32: #{intersection_gnn_forward.1} parent=1 // pred_region
      _
    $region33: #{intersection_gnn_forward.1} parent=1 // pred_fallthru
      _
    %v30 = vld [vmem:[%s0] sm:$0xff]
    %v31 = vld [vmem:[%s1] sm:$0xff]
    %s32 = scalar_lea.vmem %s1, 8
    %v33 = vld [vmem:[%s32] sm:$0xff]
    %v34 = vld [vmem:[%s2] sm:$0xff]
    %v35 = vld [vmem:[%s2 + $0x8] sm:$0xff]
    %v36 = vld [vmem:[%s3] sm:$0xff]
    %v37 = vld [vmem:[%s3 + $0x8] sm:$0xff]
    %v38 = vld [vmem:[%s4] sm:$0x1]
    %vm39 = vcmask 64512
    %v41 = vsel %vm39, %v30, 0
    %43 = vmatprep.subr.mxu0 0.0
    %44 = vmatpush1.msra.mxu0 %v31
    %45 = vmatprep.subr.mxu0 0.0
    %46 = vmatpush1.msra.mxu0 0.0
    %47 = vmatprep.subr.mxu0 0.0
    %48 = vmatpush1.msra.mxu0 0.0
    %49 = vmatprep.subr.mxu0 0.0
    %50 = vmatpush1.msra.mxu0 0.0
    %51 = vmatprep.subr.mxu0 0.0
    %52 = vmatpush1.msra.mxu0 0.0
    %53 = vmatprep.subr.mxu0 0.0
    %54 = vmatpush1.msra.mxu0 0.0
    %55 = vmatprep.subr.mxu0 0.0
    %56 = vmatpush1.msra.mxu0 0.0
    %57 = vmatprep.subr.mxu0 0.0
    %58 = vmatpush1.msra.mxu0 0.0
    %59 = vmatprep.subr.mxu0 0.0
    %60 = vmatpush1.msra.mxu0 0.0
    %61 = vmatprep.subr.mxu0 0.0
    %62 = vmatpush1.msra.mxu0 0.0
    %63 = vmatprep.subr.mxu0 0.0
    %64 = vmatpush1.msra.mxu0 0.0
    %65 = vmatprep.subr.mxu0 0.0
    %66 = vmatpush1.msra.mxu0 0.0
    %67 = vmatprep.subr.mxu0 0.0
    %68 = vmatpush1.msra.mxu0 0.0
    %69 = vmatprep.subr.mxu0 0.0
    %70 = vmatpush1.msra.mxu0 0.0
    %71 = vmatprep.subr.mxu0 0.0
    %72 = vmatpush1.msra.mxu0 0.0
    %73 = vmatprep.subr.mxu0 0.0
    %74 = vmatpush1.msra.mxu0 0.0
    %75 = vmatprep.subr.mxu0 0.0
    %76 = vmatpush1.msra.mxu0 0.0
    %77 = vmatprep.subr.mxu0 0.0
    %78 = vmatpush1.msra.mxu0 0.0
    %79 = vmatprep.subr.mxu0 0.0
    %80 = vmatpush1.msra.mxu0 0.0
    %81 = vmatprep.subr.mxu0 0.0
    %82 = vmatpush1.msra.mxu0 0.0
    %83 = vmatprep.subr.mxu0 0.0
    %84 = vmatpush1.msra.mxu0 0.0
    %85 = vmatprep.subr.mxu0 0.0
    %86 = vmatpush1.msra.mxu0 0.0
    %87 = vmatprep.subr.mxu0 0.0
    %88 = vmatpush1.msra.mxu0 0.0
    %89 = vmatprep.subr.mxu0 0.0
    %90 = vmatpush1.msra.mxu0 0.0
    %91 = vmatprep.subr.mxu0 0.0
    %92 = vmatpush1.msra.mxu0 0.0
    %93 = vmatprep.subr.mxu0 0.0
    %94 = vmatpush1.msra.mxu0 0.0
    %95 = vmatprep.subr.mxu0 0.0
    %96 = vmatpush1.msra.mxu0 0.0
    %97 = vmatprep.subr.mxu0 0.0
    %98 = vmatpush1.msra.mxu0 0.0
    %99 = vmatprep.subr.mxu0 0.0
    %100 = vmatpush1.msra.mxu0 0.0
    %101 = vmatprep.subr.mxu0 0.0
    %102 = vmatpush1.msra.mxu0 0.0
    %103 = vmatprep.subr.mxu0 0.0
    %104 = vmatpush1.msra.mxu0 0.0
    %105 = vmatprep.subr.mxu0 0.0
    %106 = vmatpush1.msra.mxu0 0.0
    %107 = vmatprep.mubr.f32.mxu0 0.0
    %108 = vmatmul.mubr.f32.gmra.mrb[0].mxu0 %v41
    %v109 = vpop.f32.mrb[0].mxu0
    %v110 = vadd.f32 0.0, %v109
    %v111 = vpop.f32.mrb[0].mxu0
    %112 = vdwg.mxu0
    %vm113 = vcmask 130048
    %v115 = vsel %vm113, %v31, 0
    %117 = vmatprep.subr.mxu0 0.0
    %118 = vmatpush1.msra.mxu0 %v36
    %119 = vmatprep.subr.mxu0 0.0
    %120 = vmatpush1.msra.mxu0 %v37
    %121 = vmatprep.subr.mxu0 0.0
    %122 = vmatpush1.msra.mxu0 0.0
    %123 = vmatprep.subr.mxu0 0.0
    %124 = vmatpush1.msra.mxu0 0.0
    %125 = vmatprep.subr.mxu0 0.0
    %126 = vmatpush1.msra.mxu0 0.0
    %127 = vmatprep.subr.mxu0 0.0
    %128 = vmatpush1.msra.mxu0 0.0
    %129 = vmatprep.subr.mxu0 0.0
    %130 = vmatpush1.msra.mxu0 0.0
    %131 = vmatprep.subr.mxu0 0.0
    %132 = vmatpush1.msra.mxu0 0.0
    %133 = vmatprep.subr.mxu0 0.0
    %134 = vmatpush1.msra.mxu0 0.0
    %135 = vmatprep.subr.mxu0 0.0
    %136 = vmatpush1.msra.mxu0 0.0
    %137 = vmatprep.subr.mxu0 0.0
    %138 = vmatpush1.msra.mxu0 0.0
    %139 = vmatprep.subr.mxu0 0.0
    %140 = vmatpush1.msra.mxu0 0.0
    %141 = vmatprep.subr.mxu0 0.0
    %142 = vmatpush1.msra.mxu0 0.0
    %143 = vmatprep.subr.mxu0 0.0
    %144 = vmatpush1.msra.mxu0 0.0
    %145 = vmatprep.subr.mxu0 0.0
    %146 = vmatpush1.msra.mxu0 0.0
    %147 = vmatprep.subr.mxu0 0.0
    %148 = vmatpush1.msra.mxu0 0.0
    %149 = vmatprep.subr.mxu0 0.0
    %150 = vmatpush1.msra.mxu0 0.0
    %151 = vmatprep.subr.mxu0 0.0
    %152 = vmatpush1.msra.mxu0 0.0
    %153 = vmatprep.subr.mxu0 0.0
    %154 = vmatpush1.msra.mxu0 0.0
    %155 = vmatprep.subr.mxu0 0.0
    %156 = vmatpush1.msra.mxu0 0.0
    %157 = vmatprep.subr.mxu0 0.0
    %158 = vmatpush1.msra.mxu0 0.0
    %159 = vmatprep.subr.mxu0 0.0
    %160 = vmatpush1.msra.mxu0 0.0
    %161 = vmatprep.subr.mxu0 0.0
    %162 = vmatpush1.msra.mxu0 0.0
    %163 = vmatprep.subr.mxu0 0.0
    %164 = vmatpush1.msra.mxu0 0.0
    %165 = vmatprep.subr.mxu0 0.0
    %166 = vmatpush1.msra.mxu0 0.0
    %167 = vmatprep.subr.mxu0 0.0
    %168 = vmatpush1.msra.mxu0 0.0
    %169 = vmatprep.subr.mxu0 0.0
    %170 = vmatpush1.msra.mxu0 0.0
    %171 = vmatprep.subr.mxu0 0.0
    %172 = vmatpush1.msra.mxu0 0.0
    %173 = vmatprep.subr.mxu0 0.0
    %174 = vmatpush1.msra.mxu0 0.0
    %175 = vmatprep.subr.mxu0 0.0
    %176 = vmatpush1.msra.mxu0 0.0
    %177 = vmatprep.subr.mxu0 0.0
    %178 = vmatpush1.msra.mxu0 0.0
    %179 = vmatprep.subr.mxu0 0.0
    %180 = vmatpush1.msra.mxu0 0.0
    %181 = vmatprep.mubr.f32.mxu0 0.0
    %182 = vmatmul.mubr.f32.gmra.mrb[0].mxu0 %v115
    %v183 = vpop.f32.mrb[0].mxu0
    %v184 = vadd.f32 0.0, %v183
    %v185 = vpop.f32.mrb[0].mxu0
    %186 = vdwg.mxu0
    %v188 = vsel %vm113, %v110, 0
    %190 = vmatprep.subr.mxu0 0.0
    %191 = vmatpush1.msra.mxu0 %v34
    %192 = vmatprep.subr.mxu0 0.0
    %193 = vmatpush1.msra.mxu0 %v35
    %194 = vmatprep.subr.mxu0 0.0
    %195 = vmatpush1.msra.mxu0 0.0
    %196 = vmatprep.subr.mxu0 0.0
    %197 = vmatpush1.msra.mxu0 0.0
    %198 = vmatprep.subr.mxu0 0.0
    %199 = vmatpush1.msra.mxu0 0.0
    %200 = vmatprep.subr.mxu0 0.0
    %201 = vmatpush1.msra.mxu0 0.0
    %202 = vmatprep.subr.mxu0 0.0
    %203 = vmatpush1.msra.mxu0 0.0
    %204 = vmatprep.subr.mxu0 0.0
    %205 = vmatpush1.msra.mxu0 0.0
    %206 = vmatprep.subr.mxu0 0.0
    %207 = vmatpush1.msra.mxu0 0.0
    %208 = vmatprep.subr.mxu0 0.0
    %209 = vmatpush1.msra.mxu0 0.0
    %210 = vmatprep.subr.mxu0 0.0
    %211 = vmatpush1.msra.mxu0 0.0
    %212 = vmatprep.subr.mxu0 0.0
    %213 = vmatpush1.msra.mxu0 0.0
    %214 = vmatprep.subr.mxu0 0.0
    %215 = vmatpush1.msra.mxu0 0.0
    %216 = vmatprep.subr.mxu0 0.0
    %217 = vmatpush1.msra.mxu0 0.0
    %218 = vmatprep.subr.mxu0 0.0
    %219 = vmatpush1.msra.mxu0 0.0
    %220 = vmatprep.subr.mxu0 0.0
    %221 = vmatpush1.msra.mxu0 0.0
    %222 = vmatprep.subr.mxu0 0.0
    %223 = vmatpush1.msra.mxu0 0.0
    %224 = vmatprep.subr.mxu0 0.0
    %225 = vmatpush1.msra.mxu0 0.0
    %226 = vmatprep.subr.mxu0 0.0
    %227 = vmatpush1.msra.mxu0 0.0
    %228 = vmatprep.subr.mxu0 0.0
    %229 = vmatpush1.msra.mxu0 0.0
    %230 = vmatprep.subr.mxu0 0.0
    %231 = vmatpush1.msra.mxu0 0.0
    %232 = vmatprep.subr.mxu0 0.0
    %233 = vmatpush1.msra.mxu0 0.0
    %234 = vmatprep.subr.mxu0 0.0
    %235 = vmatpush1.msra.mxu0 0.0
    %236 = vmatprep.subr.mxu0 0.0
    %237 = vmatpush1.msra.mxu0 0.0
    %238 = vmatprep.subr.mxu0 0.0
    %239 = vmatpush1.msra.mxu0 0.0
    %240 = vmatprep.subr.mxu0 0.0
    %241 = vmatpush1.msra.mxu0 0.0
    %242 = vmatprep.subr.mxu0 0.0
    %243 = vmatpush1.msra.mxu0 0.0
    %244 = vmatprep.subr.mxu0 0.0
    %245 = vmatpush1.msra.mxu0 0.0
    %246 = vmatprep.subr.mxu0 0.0
    %247 = vmatpush1.msra.mxu0 0.0
    %248 = vmatprep.subr.mxu0 0.0
    %249 = vmatpush1.msra.mxu0 0.0
    %250 = vmatprep.subr.mxu0 0.0
    %251 = vmatpush1.msra.mxu0 0.0
    %252 = vmatprep.subr.mxu0 0.0
    %253 = vmatpush1.msra.mxu0 0.0
    %254 = vmatprep.mubr.f32.mxu0 0.0
    %255 = vmatmul.mubr.f32.gmra.mrb[0].mxu0 %v188
    %v256 = vpop.f32.mrb[0].mxu0
    %v257 = vadd.f32 %v184, %v256
    %v258 = vpop.f32.mrb[0].mxu0
    %259 = vdwg.mxu0
    %v261 = vlaneseq
    %v262 = vshrl.u32 %v261, 7
    %v263 = vsub.s32 0, %v262
    %v264 = vrot.slane %v38, %v263
    %v266 = vadd.f32 %v257, %v264
    %v267 = vmul.f32 %v266, 0.5
    %v268 = vmul.f32 %v266, 0.70710677
    %v269 = verf.f32.pop %v268
    %v270 = vadd.f32 %v269, 1.0
    %v271 = vmul.f32 %v267, %v270
    %272 = vmatprep.subr.mxu0 0.0
    %273 = vmatpush1.msra.mxu0 %v33
    %274 = vmatprep.subr.mxu0 0.0
    %275 = vmatpush1.msra.mxu0 0.0
    %276 = vmatprep.subr.mxu0 0.0
    %277 = vmatpush1.msra.mxu0 0.0
    %278 = vmatprep.subr.mxu0 0.0
    %279 = vmatpush1.msra.mxu0 0.0
    %280 = vmatprep.subr.mxu0 0.0
    %281 = vmatpush1.msra.mxu0 0.0
    %282 = vmatprep.subr.mxu0 0.0
    %283 = vmatpush1.msra.mxu0 0.0
    %284 = vmatprep.subr.mxu0 0.0
    %285 = vmatpush1.msra.mxu0 0.0
    %286 = vmatprep.subr.mxu0 0.0
    %287 = vmatpush1.msra.mxu0 0.0
    %288 = vmatprep.subr.mxu0 0.0
    %289 = vmatpush1.msra.mxu0 0.0
    %290 = vmatprep.subr.mxu0 0.0
    %291 = vmatpush1.msra.mxu0 0.0
    %292 = vmatprep.subr.mxu0 0.0
    %293 = vmatpush1.msra.mxu0 0.0
    %294 = vmatprep.subr.mxu0 0.0
    %295 = vmatpush1.msra.mxu0 0.0
    %296 = vmatprep.subr.mxu0 0.0
    %297 = vmatpush1.msra.mxu0 0.0
    %298 = vmatprep.subr.mxu0 0.0
    %299 = vmatpush1.msra.mxu0 0.0
    %300 = vmatprep.subr.mxu0 0.0
    %301 = vmatpush1.msra.mxu0 0.0
    %302 = vmatprep.subr.mxu0 0.0
    %303 = vmatpush1.msra.mxu0 0.0
    %304 = vmatprep.subr.mxu0 0.0
    %305 = vmatpush1.msra.mxu0 0.0
    %306 = vmatprep.subr.mxu0 0.0
    %307 = vmatpush1.msra.mxu0 0.0
    %308 = vmatprep.subr.mxu0 0.0
    %309 = vmatpush1.msra.mxu0 0.0
    %310 = vmatprep.subr.mxu0 0.0
    %311 = vmatpush1.msra.mxu0 0.0
    %312 = vmatprep.subr.mxu0 0.0
    %313 = vmatpush1.msra.mxu0 0.0
    %314 = vmatprep.subr.mxu0 0.0
    %315 = vmatpush1.msra.mxu0 0.0
    %316 = vmatprep.subr.mxu0 0.0
    %317 = vmatpush1.msra.mxu0 0.0
    %318 = vmatprep.subr.mxu0 0.0
    %319 = vmatpush1.msra.mxu0 0.0
    %320 = vmatprep.subr.mxu0 0.0
    %321 = vmatpush1.msra.mxu0 0.0
    %322 = vmatprep.subr.mxu0 0.0
    %323 = vmatpush1.msra.mxu0 0.0
    %324 = vmatprep.subr.mxu0 0.0
    %325 = vmatpush1.msra.mxu0 0.0
    %326 = vmatprep.subr.mxu0 0.0
    %327 = vmatpush1.msra.mxu0 0.0
    %328 = vmatprep.subr.mxu0 0.0
    %329 = vmatpush1.msra.mxu0 0.0
    %330 = vmatprep.subr.mxu0 0.0
    %331 = vmatpush1.msra.mxu0 0.0
    %332 = vmatprep.subr.mxu0 0.0
    %333 = vmatpush1.msra.mxu0 0.0
    %334 = vmatprep.subr.mxu0 0.0
    %335 = vmatpush1.msra.mxu0 0.0
    %336 = vmatprep.mubr.f32.mxu0 0.0
    %337 = vmatmul.mubr.f32.gmra.mrb[0].mxu0 %v41
    %v338 = vpop.f32.mrb[0].mxu0
    %v339 = vadd.f32 0.0, %v338
    %v340 = vpop.f32.mrb[0].mxu0
    %341 = vdwg.mxu0
    %v343 = vsel %vm113, %v33, 0
    %345 = vmatprep.subr.mxu0 0.0
    %346 = vmatpush1.msra.mxu0 %v36
    %347 = vmatprep.subr.mxu0 0.0
    %348 = vmatpush1.msra.mxu0 %v37
    %349 = vmatprep.subr.mxu0 0.0
    %350 = vmatpush1.msra.mxu0 0.0
    %351 = vmatprep.subr.mxu0 0.0
    %352 = vmatpush1.msra.mxu0 0.0
    %353 = vmatprep.subr.mxu0 0.0
    %354 = vmatpush1.msra.mxu0 0.0
    %355 = vmatprep.subr.mxu0 0.0
    %356 = vmatpush1.msra.mxu0 0.0
    %357 = vmatprep.subr.mxu0 0.0
    %358 = vmatpush1.msra.mxu0 0.0
    %359 = vmatprep.subr.mxu0 0.0
    %360 = vmatpush1.msra.mxu0 0.0
    %361 = vmatprep.subr.mxu0 0.0
    %362 = vmatpush1.msra.mxu0 0.0
    %363 = vmatprep.subr.mxu0 0.0
    %364 = vmatpush1.msra.mxu0 0.0
    %365 = vmatprep.subr.mxu0 0.0
    %366 = vmatpush1.msra.mxu0 0.0
    %367 = vmatprep.subr.mxu0 0.0
    %368 = vmatpush1.msra.mxu0 0.0
    %369 = vmatprep.subr.mxu0 0.0
    %370 = vmatpush1.msra.mxu0 0.0
    %371 = vmatprep.subr.mxu0 0.0
    %372 = vmatpush1.msra.mxu0 0.0
    %373 = vmatprep.subr.mxu0 0.0
    %374 = vmatpush1.msra.mxu0 0.0
    %375 = vmatprep.subr.mxu0 0.0
    %376 = vmatpush1.msra.mxu0 0.0
    %377 = vmatprep.subr.mxu0 0.0
    %378 = vmatpush1.msra.mxu0 0.0
    %379 = vmatprep.subr.mxu0 0.0
    %380 = vmatpush1.msra.mxu0 0.0
    %381 = vmatprep.subr.mxu0 0.0
    %382 = vmatpush1.msra.mxu0 0.0
    %383 = vmatprep.subr.mxu0 0.0
    %384 = vmatpush1.msra.mxu0 0.0
    %385 = vmatprep.subr.mxu0 0.0
    %386 = vmatpush1.msra.mxu0 0.0
    %387 = vmatprep.subr.mxu0 0.0
    %388 = vmatpush1.msra.mxu0 0.0
    %389 = vmatprep.subr.mxu0 0.0
    %390 = vmatpush1.msra.mxu0 0.0
    %391 = vmatprep.subr.mxu0 0.0
    %392 = vmatpush1.msra.mxu0 0.0
    %393 = vmatprep.subr.mxu0 0.0
    %394 = vmatpush1.msra.mxu0 0.0
    %395 = vmatprep.subr.mxu0 0.0
    %396 = vmatpush1.msra.mxu0 0.0
    %397 = vmatprep.subr.mxu0 0.0
    %398 = vmatpush1.msra.mxu0 0.0
    %399 = vmatprep.subr.mxu0 0.0
    %400 = vmatpush1.msra.mxu0 0.0
    %401 = vmatprep.subr.mxu0 0.0
    %402 = vmatpush1.msra.mxu0 0.0
    %403 = vmatprep.subr.mxu0 0.0
    %404 = vmatpush1.msra.mxu0 0.0
    %405 = vmatprep.subr.mxu0 0.0
    %406 = vmatpush1.msra.mxu0 0.0
    %407 = vmatprep.subr.mxu0 0.0
    %408 = vmatpush1.msra.mxu0 0.0
    %409 = vmatprep.mubr.f32.mxu0 0.0
    %410 = vmatmul.mubr.f32.gmra.mrb[0].mxu0 %v343
    %v411 = vpop.f32.mrb[0].mxu0
    %v412 = vadd.f32 0.0, %v411
    %v413 = vpop.f32.mrb[0].mxu0
    %414 = vdwg.mxu0
    %v416 = vsel %vm113, %v339, 0
    %418 = vmatprep.subr.mxu0 0.0
    %419 = vmatpush1.msra.mxu0 %v34
    %420 = vmatprep.subr.mxu0 0.0
    %421 = vmatpush1.msra.mxu0 %v35
    %422 = vmatprep.subr.mxu0 0.0
    %423 = vmatpush1.msra.mxu0 0.0
    %424 = vmatprep.subr.mxu0 0.0
    %425 = vmatpush1.msra.mxu0 0.0
    %426 = vmatprep.subr.mxu0 0.0
    %427 = vmatpush1.msra.mxu0 0.0
    %428 = vmatprep.subr.mxu0 0.0
    %429 = vmatpush1.msra.mxu0 0.0
    %430 = vmatprep.subr.mxu0 0.0
    %431 = vmatpush1.msra.mxu0 0.0
    %432 = vmatprep.subr.mxu0 0.0
    %433 = vmatpush1.msra.mxu0 0.0
    %434 = vmatprep.subr.mxu0 0.0
    %435 = vmatpush1.msra.mxu0 0.0
    %436 = vmatprep.subr.mxu0 0.0
    %437 = vmatpush1.msra.mxu0 0.0
    %438 = vmatprep.subr.mxu0 0.0
    %439 = vmatpush1.msra.mxu0 0.0
    %440 = vmatprep.subr.mxu0 0.0
    %441 = vmatpush1.msra.mxu0 0.0
    %442 = vmatprep.subr.mxu0 0.0
    %443 = vmatpush1.msra.mxu0 0.0
    %444 = vmatprep.subr.mxu0 0.0
    %445 = vmatpush1.msra.mxu0 0.0
    %446 = vmatprep.subr.mxu0 0.0
    %447 = vmatpush1.msra.mxu0 0.0
    %448 = vmatprep.subr.mxu0 0.0
    %449 = vmatpush1.msra.mxu0 0.0
    %450 = vmatprep.subr.mxu0 0.0
    %451 = vmatpush1.msra.mxu0 0.0
    %452 = vmatprep.subr.mxu0 0.0
    %453 = vmatpush1.msra.mxu0 0.0
    %454 = vmatprep.subr.mxu0 0.0
    %455 = vmatpush1.msra.mxu0 0.0
    %456 = vmatprep.subr.mxu0 0.0
    %457 = vmatpush1.msra.mxu0 0.0
    %458 = vmatprep.subr.mxu0 0.0
    %459 = vmatpush1.msra.mxu0 0.0
    %460 = vmatprep.subr.mxu0 0.0
    %461 = vmatpush1.msra.mxu0 0.0
    %462 = vmatprep.subr.mxu0 0.0
    %463 = vmatpush1.msra.mxu0 0.0
    %464 = vmatprep.subr.mxu0 0.0
    %465 = vmatpush1.msra.mxu0 0.0
    %466 = vmatprep.subr.mxu0 0.0
    %467 = vmatpush1.msra.mxu0 0.0
    %468 = vmatprep.subr.mxu0 0.0
    %469 = vmatpush1.msra.mxu0 0.0
    %470 = vmatprep.subr.mxu0 0.0
    %471 = vmatpush1.msra.mxu0 0.0
    %472 = vmatprep.subr.mxu0 0.0
    %473 = vmatpush1.msra.mxu0 0.0
    %474 = vmatprep.subr.mxu0 0.0
    %475 = vmatpush1.msra.mxu0 0.0
    %476 = vmatprep.subr.mxu0 0.0
    %477 = vmatpush1.msra.mxu0 0.0
    %478 = vmatprep.subr.mxu0 0.0
    %479 = vmatpush1.msra.mxu0 0.0
    %480 = vmatprep.subr.mxu0 0.0
    %481 = vmatpush1.msra.mxu0 0.0
    %482 = vmatprep.mubr.f32.mxu0 0.0
    %483 = vmatmul.mubr.f32.gmra.mrb[0].mxu0 %v416
    %v484 = vpop.f32.mrb[0].mxu0
    %v485 = vadd.f32 %v412, %v484
    %v486 = vpop.f32.mrb[0].mxu0
    %487 = vdwg.mxu0
    %v488 = vadd.f32 %v485, %v264
    %v489 = vmul.f32 %v488, 0.5
    %v490 = vmul.f32 %v488, 0.70710677
    %v491 = verf.f32.pop %v490
    %v492 = vadd.f32 %v491, 1.0
    %v493 = vmul.f32 %v489, %v492
    %v494 = vld [vmem:[%s5] sm:$0xff]
    %v495 = vld [vmem:[%s5 + $0x8] sm:$0xff]
    %v496 = vld [vmem:[%s5 + $0x10] sm:$0xff]
    %v497 = vld [vmem:[%s5 + $0x18] sm:$0xff]
    %v498 = vld [vmem:[%s6] sm:$0xff]
    %v499 = vld [vmem:[%s6 + $0x8] sm:$0xff]
    %v500 = vld [vmem:[%s6 + $0x10] sm:$0xff]
    %v501 = vld [vmem:[%s6 + $0x18] sm:$0xff]
    %v502 = vld [vmem:[%s7] sm:$0x1]
    %503 = vmatprep.subr.mxu0 0.0
    %504 = vmatpush1.msra.mxu0 %v271
    %505 = vmatprep.subr.mxu0 0.0
    %506 = vmatpush1.msra.mxu0 0.0
    %507 = vmatprep.subr.mxu0 0.0
    %508 = vmatpush1.msra.mxu0 0.0
    %509 = vmatprep.subr.mxu0 0.0
    %510 = vmatpush1.msra.mxu0 0.0
    %511 = vmatprep.subr.mxu0 0.0
    %512 = vmatpush1.msra.mxu0 0.0
    %513 = vmatprep.subr.mxu0 0.0
    %514 = vmatpush1.msra.mxu0 0.0
    %515 = vmatprep.subr.mxu0 0.0
    %516 = vmatpush1.msra.mxu0 0.0
    %517 = vmatprep.subr.mxu0 0.0
    %518 = vmatpush1.msra.mxu0 0.0
    %519 = vmatprep.subr.mxu0 0.0
    %520 = vmatpush1.msra.mxu0 0.0
    %521 = vmatprep.subr.mxu0 0.0
    %522 = vmatpush1.msra.mxu0 0.0
    %523 = vmatprep.subr.mxu0 0.0
    %524 = vmatpush1.msra.mxu0 0.0
    %525 = vmatprep.subr.mxu0 0.0
    %526 = vmatpush1.msra.mxu0 0.0
    %527 = vmatprep.subr.mxu0 0.0
    %528 = vmatpush1.msra.mxu0 0.0
    %529 = vmatprep.subr.mxu0 0.0
    %530 = vmatpush1.msra.mxu0 0.0
    %531 = vmatprep.subr.mxu0 0.0
    %532 = vmatpush1.msra.mxu0 0.0
    %533 = vmatprep.subr.mxu0 0.0
    %534 = vmatpush1.msra.mxu0 0.0
    %535 = vmatprep.subr.mxu0 0.0
    %536 = vmatpush1.msra.mxu0 0.0
    %537 = vmatprep.subr.mxu0 0.0
    %538 = vmatpush1.msra.mxu0 0.0
    %539 = vmatprep.subr.mxu0 0.0
    %540 = vmatpush1.msra.mxu0 0.0
    %541 = vmatprep.subr.mxu0 0.0
    %542 = vmatpush1.msra.mxu0 0.0
    %543 = vmatprep.subr.mxu0 0.0
    %544 = vmatpush1.msra.mxu0 0.0
    %545 = vmatprep.subr.mxu0 0.0
    %546 = vmatpush1.msra.mxu0 0.0
    %547 = vmatprep.subr.mxu0 0.0
    %548 = vmatpush1.msra.mxu0 0.0
    %549 = vmatprep.subr.mxu0 0.0
    %550 = vmatpush1.msra.mxu0 0.0
    %551 = vmatprep.subr.mxu0 0.0
    %552 = vmatpush1.msra.mxu0 0.0
    %553 = vmatprep.subr.mxu0 0.0
    %554 = vmatpush1.msra.mxu0 0.0
    %555 = vmatprep.subr.mxu0 0.0
    %556 = vmatpush1.msra.mxu0 0.0
    %557 = vmatprep.subr.mxu0 0.0
    %558 = vmatpush1.msra.mxu0 0.0
    %559 = vmatprep.subr.mxu0 0.0
    %560 = vmatpush1.msra.mxu0 0.0
    %561 = vmatprep.subr.mxu0 0.0
    %562 = vmatpush1.msra.mxu0 0.0
    %563 = vmatprep.subr.mxu0 0.0
    %564 = vmatpush1.msra.mxu0 0.0
    %565 = vmatprep.subr.mxu0 0.0
    %566 = vmatpush1.msra.mxu0 0.0
    %567 = vmatprep.mubr.f32.mxu0 0.0
    %568 = vmatmul.mubr.f32.gmra.mrb[0].mxu0 %v41
    %v569 = vpop.f32.mrb[0].mxu0
    %v570 = vadd.f32 0.0, %v569
    %v571 = vpop.f32.mrb[0].mxu0
    %572 = vdwg.mxu0
    %vm573 = vcmask 261120
    %v575 = vsel %vm573, %v271, 0
    %577 = vmatprep.subr.mxu0 0.0
    %578 = vmatpush1.msra.mxu0 %v498
    %579 = vmatprep.subr.mxu0 0.0
    %580 = vmatpush1.msra.mxu0 %v499
    %581 = vmatprep.subr.mxu0 0.0
    %582 = vmatpush1.msra.mxu0 %v500
    %583 = vmatprep.subr.mxu0 0.0
    %584 = vmatpush1.msra.mxu0 %v501
    %585 = vmatprep.subr.mxu0 0.0
    %586 = vmatpush1.msra.mxu0 0.0
    %587 = vmatprep.subr.mxu0 0.0
    %588 = vmatpush1.msra.mxu0 0.0
    %589 = vmatprep.subr.mxu0 0.0
    %590 = vmatpush1.msra.mxu0 0.0
    %591 = vmatprep.subr.mxu0 0.0
    %592 = vmatpush1.msra.mxu0 0.0
    %593 = vmatprep.subr.mxu0 0.0
    %594 = vmatpush1.msra.mxu0 0.0
    %595 = vmatprep.subr.mxu0 0.0
    %596 = vmatpush1.msra.mxu0 0.0
    %597 = vmatprep.subr.mxu0 0.0
    %598 = vmatpush1.msra.mxu0 0.0
    %599 = vmatprep.subr.mxu0 0.0
    %600 = vmatpush1.msra.mxu0 0.0
    %601 = vmatprep.subr.mxu0 0.0
    %602 = vmatpush1.msra.mxu0 0.0
    %603 = vmatprep.subr.mxu0 0.0
    %604 = vmatpush1.msra.mxu0 0.0
    %605 = vmatprep.subr.mxu0 0.0
    %606 = vmatpush1.msra.mxu0 0.0
    %607 = vmatprep.subr.mxu0 0.0
    %608 = vmatpush1.msra.mxu0 0.0
    %609 = vmatprep.subr.mxu0 0.0
    %610 = vmatpush1.msra.mxu0 0.0
    %611 = vmatprep.subr.mxu0 0.0
    %612 = vmatpush1.msra.mxu0 0.0
    %613 = vmatprep.subr.mxu0 0.0
    %614 = vmatpush1.msra.mxu0 0.0
    %615 = vmatprep.subr.mxu0 0.0
    %616 = vmatpush1.msra.mxu0 0.0
    %617 = vmatprep.subr.mxu0 0.0
    %618 = vmatpush1.msra.mxu0 0.0
    %619 = vmatprep.subr.mxu0 0.0
    %620 = vmatpush1.msra.mxu0 0.0
    %621 = vmatprep.subr.mxu0 0.0
    %622 = vmatpush1.msra.mxu0 0.0
    %623 = vmatprep.subr.mxu0 0.0
    %624 = vmatpush1.msra.mxu0 0.0
    %625 = vmatprep.subr.mxu0 0.0
    %626 = vmatpush1.msra.mxu0 0.0
    %627 = vmatprep.subr.mxu0 0.0
    %628 = vmatpush1.msra.mxu0 0.0
    %629 = vmatprep.subr.mxu0 0.0
    %630 = vmatpush1.msra.mxu0 0.0
    %631 = vmatprep.subr.mxu0 0.0
    %632 = vmatpush1.msra.mxu0 0.0
    %633 = vmatprep.subr.mxu0 0.0
    %634 = vmatpush1.msra.mxu0 0.0
    %635 = vmatprep.subr.mxu0 0.0
    %636 = vmatpush1.msra.mxu0 0.0
    %637 = vmatprep.subr.mxu0 0.0
    %638 = vmatpush1.msra.mxu0 0.0
    %639 = vmatprep.subr.mxu0 0.0
    %640 = vmatpush1.msra.mxu0 0.0
    %641 = vmatprep.mubr.f32.mxu0 0.0
    %642 = vmatmul.mubr.f32.gmra.mrb[0].mxu0 %v575
    %v643 = vpop.f32.mrb[0].mxu0
    %v644 = vadd.f32 0.0, %v643
    %v645 = vpop.f32.mrb[0].mxu0
    %646 = vdwg.mxu0
    %v648 = vsel %vm573, %v570, 0
    %650 = vmatprep.subr.mxu0 0.0
    %651 = vmatpush1.msra.mxu0 %v494
    %652 = vmatprep.subr.mxu0 0.0
    %653 = vmatpush1.msra.mxu0 %v495
    %654 = vmatprep.subr.mxu0 0.0
    %655 = vmatpush1.msra.mxu0 %v496
    %656 = vmatprep.subr.mxu0 0.0
    %657 = vmatpush1.msra.mxu0 %v497
    %658 = vmatprep.subr.mxu0 0.0
    %659 = vmatpush1.msra.mxu0 0.0
    %660 = vmatprep.subr.mxu0 0.0
    %661 = vmatpush1.msra.mxu0 0.0
    %662 = vmatprep.subr.mxu0 0.0
    %663 = vmatpush1.msra.mxu0 0.0
    %664 = vmatprep.subr.mxu0 0.0
    %665 = vmatpush1.msra.mxu0 0.0
    %666 = vmatprep.subr.mxu0 0.0
    %667 = vmatpush1.msra.mxu0 0.0
    %668 = vmatprep.subr.mxu0 0.0
    %669 = vmatpush1.msra.mxu0 0.0
    %670 = vmatprep.subr.mxu0 0.0
    %671 = vmatpush1.msra.mxu0 0.0
    %672 = vmatprep.subr.mxu0 0.0
    %673 = vmatpush1.msra.mxu0 0.0
    %674 = vmatprep.subr.mxu0 0.0
    %675 = vmatpush1.msra.mxu0 0.0
    %676 = vmatprep.subr.mxu0 0.0
    %677 = vmatpush1.msra.mxu0 0.0
    %678 = vmatprep.subr.mxu0 0.0
    %679 = vmatpush1.msra.mxu0 0.0
    %680 = vmatprep.subr.mxu0 0.0
    %681 = vmatpush1.msra.mxu0 0.0
    %682 = vmatprep.subr.mxu0 0.0
    %683 = vmatpush1.msra.mxu0 0.0
    %684 = vmatprep.subr.mxu0 0.0
    %685 = vmatpush1.msra.mxu0 0.0
    %686 = vmatprep.subr.mxu0 0.0
    %687 = vmatpush1.msra.mxu0 0.0
    %688 = vmatprep.subr.mxu0 0.0
    %689 = vmatpush1.msra.mxu0 0.0
    %690 = vmatprep.subr.mxu0 0.0
    %691 = vmatpush1.msra.mxu0 0.0
    %692 = vmatprep.subr.mxu0 0.0
    %693 = vmatpush1.msra.mxu0 0.0
    %694 = vmatprep.subr.mxu0 0.0
    %695 = vmatpush1.msra.mxu0 0.0
    %696 = vmatprep.subr.mxu0 0.0
    %697 = vmatpush1.msra.mxu0 0.0
    %698 = vmatprep.subr.mxu0 0.0
    %699 = vmatpush1.msra.mxu0 0.0
    %700 = vmatprep.subr.mxu0 0.0
    %701 = vmatpush1.msra.mxu0 0.0
    %702 = vmatprep.subr.mxu0 0.0
    %703 = vmatpush1.msra.mxu0 0.0
    %704 = vmatprep.subr.mxu0 0.0
    %705 = vmatpush1.msra.mxu0 0.0
    %706 = vmatprep.subr.mxu0 0.0
    %707 = vmatpush1.msra.mxu0 0.0
    %708 = vmatprep.subr.mxu0 0.0
    %709 = vmatpush1.msra.mxu0 0.0
    %710 = vmatprep.subr.mxu0 0.0
    %711 = vmatpush1.msra.mxu0 0.0
    %712 = vmatprep.subr.mxu0 0.0
    %713 = vmatpush1.msra.mxu0 0.0
    %714 = vmatprep.mubr.f32.mxu0 0.0
    %715 = vmatmul.mubr.f32.gmra.mrb[0].mxu0 %v648
    %v716 = vpop.f32.mrb[0].mxu0
    %v717 = vadd.f32 %v644, %v716
    %v718 = vpop.f32.mrb[0].mxu0
    %719 = vdwg.mxu0
    %v721 = vlaneseq
    %v722 = vshrl.u32 %v721, 7
    %v723 = vsub.s32 0, %v722
    %v724 = vrot.slane %v502, %v723
    %v726 = vadd.f32 %v717, %v724
    %v727 = vmul.f32 %v726, 0.5
    %v728 = vmul.f32 %v726, 0.70710677
    %v729 = verf.f32.pop %v728
    %v730 = vadd.f32 %v729, 1.0
    %v731 = vmul.f32 %v727, %v730
    %732 = vmatprep.subr.mxu0 0.0
    %733 = vmatpush1.msra.mxu0 %v493
    %734 = vmatprep.subr.mxu0 0.0
    %735 = vmatpush1.msra.mxu0 0.0
    %736 = vmatprep.subr.mxu0 0.0
    %737 = vmatpush1.msra.mxu0 0.0
    %738 = vmatprep.subr.mxu0 0.0
    %739 = vmatpush1.msra.mxu0 0.0
    %740 = vmatprep.subr.mxu0 0.0
    %741 = vmatpush1.msra.mxu0 0.0
    %742 = vmatprep.subr.mxu0 0.0
    %743 = vmatpush1.msra.mxu0 0.0
    %744 = vmatprep.subr.mxu0 0.0
    %745 = vmatpush1.msra.mxu0 0.0
    %746 = vmatprep.subr.mxu0 0.0
    %747 = vmatpush1.msra.mxu0 0.0
    %748 = vmatprep.subr.mxu0 0.0
    %749 = vmatpush1.msra.mxu0 0.0
    %750 = vmatprep.subr.mxu0 0.0
    %751 = vmatpush1.msra.mxu0 0.0
    %752 = vmatprep.subr.mxu0 0.0
    %753 = vmatpush1.msra.mxu0 0.0
    %754 = vmatprep.subr.mxu0 0.0
    %755 = vmatpush1.msra.mxu0 0.0
    %756 = vmatprep.subr.mxu0 0.0
    %757 = vmatpush1.msra.mxu0 0.0
    %758 = vmatprep.subr.mxu0 0.0
    %759 = vmatpush1.msra.mxu0 0.0
    %760 = vmatprep.subr.mxu0 0.0
    %761 = vmatpush1.msra.mxu0 0.0
    %762 = vmatprep.subr.mxu0 0.0
    %763 = vmatpush1.msra.mxu0 0.0
    %764 = vmatprep.subr.mxu0 0.0
    %765 = vmatpush1.msra.mxu0 0.0
    %766 = vmatprep.subr.mxu0 0.0
    %767 = vmatpush1.msra.mxu0 0.0
    %768 = vmatprep.subr.mxu0 0.0
    %769 = vmatpush1.msra.mxu0 0.0
    %770 = vmatprep.subr.mxu0 0.0
    %771 = vmatpush1.msra.mxu0 0.0
    %772 = vmatprep.subr.mxu0 0.0
    %773 = vmatpush1.msra.mxu0 0.0
    %774 = vmatprep.subr.mxu0 0.0
    %775 = vmatpush1.msra.mxu0 0.0
    %776 = vmatprep.subr.mxu0 0.0
    %777 = vmatpush1.msra.mxu0 0.0
    %778 = vmatprep.subr.mxu0 0.0
    %779 = vmatpush1.msra.mxu0 0.0
    %780 = vmatprep.subr.mxu0 0.0
    %781 = vmatpush1.msra.mxu0 0.0
    %782 = vmatprep.subr.mxu0 0.0
    %783 = vmatpush1.msra.mxu0 0.0
    %784 = vmatprep.subr.mxu0 0.0
    %785 = vmatpush1.msra.mxu0 0.0
    %786 = vmatprep.subr.mxu0 0.0
    %787 = vmatpush1.msra.mxu0 0.0
    %788 = vmatprep.subr.mxu0 0.0
    %789 = vmatpush1.msra.mxu0 0.0
    %790 = vmatprep.subr.mxu0 0.0
    %791 = vmatpush1.msra.mxu0 0.0
    %792 = vmatprep.subr.mxu0 0.0
    %793 = vmatpush1.msra.mxu0 0.0
    %794 = vmatprep.subr.mxu0 0.0
    %795 = vmatpush1.msra.mxu0 0.0
    %796 = vmatprep.mubr.f32.mxu0 0.0
    %797 = vmatmul.mubr.f32.gmra.mrb[0].mxu0 %v41
    %v798 = vpop.f32.mrb[0].mxu0
    %v799 = vadd.f32 0.0, %v798
    %v800 = vpop.f32.mrb[0].mxu0
    %801 = vdwg.mxu0
    %v803 = vsel %vm573, %v493, 0
    %805 = vmatprep.subr.mxu0 0.0
    %806 = vmatpush1.msra.mxu0 %v498
    %807 = vmatprep.subr.mxu0 0.0
    %808 = vmatpush1.msra.mxu0 %v499
    %809 = vmatprep.subr.mxu0 0.0
    %810 = vmatpush1.msra.mxu0 %v500
    %811 = vmatprep.subr.mxu0 0.0
    %812 = vmatpush1.msra.mxu0 %v501
    %813 = vmatprep.subr.mxu0 0.0
    %814 = vmatpush1.msra.mxu0 0.0
    %815 = vmatprep.subr.mxu0 0.0
    %816 = vmatpush1.msra.mxu0 0.0
    %817 = vmatprep.subr.mxu0 0.0
    %818 = vmatpush1.msra.mxu0 0.0
    %819 = vmatprep.subr.mxu0 0.0
    %820 = vmatpush1.msra.mxu0 0.0
    %821 = vmatprep.subr.mxu0 0.0
    %822 = vmatpush1.msra.mxu0 0.0
    %823 = vmatprep.subr.mxu0 0.0
    %824 = vmatpush1.msra.mxu0 0.0
    %825 = vmatprep.subr.mxu0 0.0
    %826 = vmatpush1.msra.mxu0 0.0
    %827 = vmatprep.subr.mxu0 0.0
    %828 = vmatpush1.msra.mxu0 0.0
    %829 = vmatprep.subr.mxu0 0.0
    %830 = vmatpush1.msra.mxu0 0.0
    %831 = vmatprep.subr.mxu0 0.0
    %832 = vmatpush1.msra.mxu0 0.0
    %833 = vmatprep.subr.mxu0 0.0
    %834 = vmatpush1.msra.mxu0 0.0
    %835 = vmatprep.subr.mxu0 0.0
    %836 = vmatpush1.msra.mxu0 0.0
    %837 = vmatprep.subr.mxu0 0.0
    %838 = vmatpush1.msra.mxu0 0.0
    %839 = vmatprep.subr.mxu0 0.0
    %840 = vmatpush1.msra.mxu0 0.0
    %841 = vmatprep.subr.mxu0 0.0
    %842 = vmatpush1.msra.mxu0 0.0
    %843 = vmatprep.subr.mxu0 0.0
    %844 = vmatpush1.msra.mxu0 0.0
    %845 = vmatprep.subr.mxu0 0.0
    %846 = vmatpush1.msra.mxu0 0.0
    %847 = vmatprep.subr.mxu0 0.0
    %848 = vmatpush1.msra.mxu0 0.0
    %849 = vmatprep.subr.mxu0 0.0
    %850 = vmatpush1.msra.mxu0 0.0
    %851 = vmatprep.subr.mxu0 0.0
    %852 = vmatpush1.msra.mxu0 0.0
    %853 = vmatprep.subr.mxu0 0.0
    %854 = vmatpush1.msra.mxu0 0.0
    %855 = vmatprep.subr.mxu0 0.0
    %856 = vmatpush1.msra.mxu0 0.0
    %857 = vmatprep.subr.mxu0 0.0
    %858 = vmatpush1.msra.mxu0 0.0
    %859 = vmatprep.subr.mxu0 0.0
    %860 = vmatpush1.msra.mxu0 0.0
    %861 = vmatprep.subr.mxu0 0.0
    %862 = vmatpush1.msra.mxu0 0.0
    %863 = vmatprep.subr.mxu0 0.0
    %864 = vmatpush1.msra.mxu0 0.0
    %865 = vmatprep.subr.mxu0 0.0
    %866 = vmatpush1.msra.mxu0 0.0
    %867 = vmatprep.subr.mxu0 0.0
    %868 = vmatpush1.msra.mxu0 0.0
    %869 = vmatprep.mubr.f32.mxu0 0.0
    %870 = vmatmul.mubr.f32.gmra.mrb[0].mxu0 %v803
    %v871 = vpop.f32.mrb[0].mxu0
    %v872 = vadd.f32 0.0, %v871
    %v873 = vpop.f32.mrb[0].mxu0
    %874 = vdwg.mxu0
    %v876 = vsel %vm573, %v799, 0
    %878 = vmatprep.subr.mxu0 0.0
    %879 = vmatpush1.msra.mxu0 %v494
    %880 = vmatprep.subr.mxu0 0.0
    %881 = vmatpush1.msra.mxu0 %v495
    %882 = vmatprep.subr.mxu0 0.0
    %883 = vmatpush1.msra.mxu0 %v496
    %884 = vmatprep.subr.mxu0 0.0
    %885 = vmatpush1.msra.mxu0 %v497
    %886 = vmatprep.subr.mxu0 0.0
    %887 = vmatpush1.msra.mxu0 0.0
    %888 = vmatprep.subr.mxu0 0.0
    %889 = vmatpush1.msra.mxu0 0.0
    %890 = vmatprep.subr.mxu0 0.0
    %891 = vmatpush1.msra.mxu0 0.0
    %892 = vmatprep.subr.mxu0 0.0
    %893 = vmatpush1.msra.mxu0 0.0
    %894 = vmatprep.subr.mxu0 0.0
    %895 = vmatpush1.msra.mxu0 0.0
    %896 = vmatprep.subr.mxu0 0.0
    %897 = vmatpush1.msra.mxu0 0.0
    %898 = vmatprep.subr.mxu0 0.0
    %899 = vmatpush1.msra.mxu0 0.0
    %900 = vmatprep.subr.mxu0 0.0
    %901 = vmatpush1.msra.mxu0 0.0
    %902 = vmatprep.subr.mxu0 0.0
    %903 = vmatpush1.msra.mxu0 0.0
    %904 = vmatprep.subr.mxu0 0.0
    %905 = vmatpush1.msra.mxu0 0.0
    %906 = vmatprep.subr.mxu0 0.0
    %907 = vmatpush1.msra.mxu0 0.0
    %908 = vmatprep.subr.mxu0 0.0
    %909 = vmatpush1.msra.mxu0 0.0
    %910 = vmatprep.subr.mxu0 0.0
    %911 = vmatpush1.msra.mxu0 0.0
    %912 = vmatprep.subr.mxu0 0.0
    %913 = vmatpush1.msra.mxu0 0.0
    %914 = vmatprep.subr.mxu0 0.0
    %915 = vmatpush1.msra.mxu0 0.0
    %916 = vmatprep.subr.mxu0 0.0
    %917 = vmatpush1.msra.mxu0 0.0
    %918 = vmatprep.subr.mxu0 0.0
    %919 = vmatpush1.msra.mxu0 0.0
    %920 = vmatprep.subr.mxu0 0.0
    %921 = vmatpush1.msra.mxu0 0.0
    %922 = vmatprep.subr.mxu0 0.0
    %923 = vmatpush1.msra.mxu0 0.0
    %924 = vmatprep.subr.mxu0 0.0
    %925 = vmatpush1.msra.mxu0 0.0
    %926 = vmatprep.subr.mxu0 0.0
    %927 = vmatpush1.msra.mxu0 0.0
    %928 = vmatprep.subr.mxu0 0.0
    %929 = vmatpush1.msra.mxu0 0.0
    %930 = vmatprep.subr.mxu0 0.0
    %931 = vmatpush1.msra.mxu0 0.0
    %932 = vmatprep.subr.mxu0 0.0
    %933 = vmatpush1.msra.mxu0 0.0
    %934 = vmatprep.subr.mxu0 0.0
    %935 = vmatpush1.msra.mxu0 0.0
    %936 = vmatprep.subr.mxu0 0.0
    %937 = vmatpush1.msra.mxu0 0.0
    %938 = vmatprep.subr.mxu0 0.0
    %939 = vmatpush1.msra.mxu0 0.0
    %940 = vmatprep.subr.mxu0 0.0
    %941 = vmatpush1.msra.mxu0 0.0
    %942 = vmatprep.mubr.f32.mxu0 0.0
    %943 = vmatmul.mubr.f32.gmra.mrb[0].mxu0 %v876
    %v944 = vpop.f32.mrb[0].mxu0
    %v945 = vadd.f32 %v872, %v944
    %v946 = vpop.f32.mrb[0].mxu0
    %947 = vdwg.mxu0
    %v948 = vadd.f32 %v945, %v724
    %v949 = vmul.f32 %v948, 0.5
    %v950 = vmul.f32 %v948, 0.70710677
    %v951 = verf.f32.pop %v950
    %v952 = vadd.f32 %v951, 1.0
    %v953 = vmul.f32 %v949, %v952
    %954 = vst.msk [vmem:[#allocation2] sm:$0xff] %vm113, %v731
    %s955 = scalar_lea.vmem [#allocation2], 8
    %956 = vst.msk [vmem:[%s955] sm:$0xff] %vm113, %v953
    // Predicated region
    $region34: #{intersection_gnn_forward.1} parent=1 // pred_check
      _
    $region35: #{intersection_gnn_forward.1} parent=1 // pred_check_branch
      %958 = sbr.rel (0) target = $region37
    $region36: #{intersection_gnn_forward.1} parent=1 // pred_region
      %s960 = ssub.s32 256, 256
      %961 = vsyncadd [#allocation3], %s960
      %s962 = sshll.u32 [#allocation2], 4
      %s963 = int_to_ptr.vmem [resolvable:$true] %s962
      %968 = dma.vmem_to_hbm [thread:$0]  %s963, 256, %s8, [#allocation3], 128, 128, 8
    $region37: #{intersection_gnn_forward.1} parent=1 // pred_fallthru
      _
    // Predicated region
    $region38: #{intersection_gnn_forward.1} parent=1 // pred_check
      _
    $region39: #{intersection_gnn_forward.1} parent=1 // pred_check_branch
      %970 = sbr.rel (0) target = $region41
    $region40: #{intersection_gnn_forward.1} parent=1 // pred_region
      %971 = dma.done [#allocation3], 256
    $region41: #{intersection_gnn_forward.1} parent=1 // pred_fallthru
      _
    %972 = vsyncpa [#allocation3], 1

</llo_original>
